<compile_context>
chip_gen: v6e
topology: v6e:2x2x1
jax: 0.10.0
libtpu: 0.0.40
codegen_flags: <defaults>
</compile_context>

<pallas_src>
import functools

import jax
import jax.numpy as jnp
from jax.experimental import pallas as pl
from jax.experimental.pallas import tpu as pltpu


# ---------------------------------------------------------------------------
# Phase 1: one-shot small kernel -> fused mask = block_mask * (numel / keeped)
# ---------------------------------------------------------------------------
def _fused_mask_kernel(maskp_ref, fused_ref, *, block_size, H, W, numel):
    """maskp_ref: (Cm, H+k-1, W+k-1) zero-padded 0/1 seed mask.
    fused_ref:   (Cm, H, W) = (1 - dilated_mask) * (numel / keeped), x.dtype."""
    mp = maskp_ref[...].astype(jnp.float32)          # (Cm, Hp, Wp)

    # Separable stride-1 max pool: W direction first, then H direction.
    t = mp[:, :, 0:W]
    for j in range(1, block_size):
        t = jnp.maximum(t, mp[:, :, j:j + W])        # (Cm, Hp, W)
    p = t[:, 0:H, :]
    for i in range(1, block_size):
        p = jnp.maximum(p, t[:, i:i + H, :])         # (Cm, H, W)

    block_mask = 1.0 - p                              # f32
    keeped = jnp.maximum(jnp.sum(block_mask), 1.0)    # guard: all-dropped case
    scale = jnp.float32(numel) / keeped               # single f32 scalar
    fused_ref[...] = (block_mask * scale).astype(fused_ref.dtype)


# ---------------------------------------------------------------------------
# Phase 2: hot path — tiled, lane-dense elementwise apply
# ---------------------------------------------------------------------------
def _apply_kernel(x_ref, m_ref, o_ref):
    # x_ref: (tile_c, H*W)   m_ref: (tile_c, H*W) or (1, H*W) (share_channel)
    o_ref[...] = x_ref[...] * m_ref[...]


def _pick_channel_tile(C, HW, itemsize, budget_bytes=8 * 1024 * 1024):
    """Largest channel tile (divisor of C, multiple of 8 or == C) whose
    double-buffered x/out/mask tiles fit a conservative VMEM budget that is
    safe on v5e (16 MiB scoped default) and v7x (64 MiB physical)."""
    max_tc = max(1, budget_bytes // (6 * HW * itemsize))
    if C <= max_tc:
        return C                      # full-dim block is always legal
    tc = (max_tc // 8) * 8
    while tc >= 8:
        if C % tc == 0:
            return tc
        tc -= 8
    # TODO(synk): also tile over H*W for shapes with no suitable channel
    # divisor; fall back to full C for now.
    return C


def dropblock2d_forward(x, seed_mask, block_size):
    """x: (N, C, H, W).  seed_mask: (Cm, H, W) float 0/1, Cm in {1, C}."""
    N, C, H, W = x.shape
    Cm = seed_mask.shape[0]
    pad = block_size // 2
    maskp = jnp.pad(seed_mask.astype(jnp.float32),
                    ((0, 0), (pad, pad), (pad, pad)))
    Hp, Wp = maskp.shape[1], maskp.shape[2]
    numel = float(Cm * H * W)         # block_mask.numel() in the torch module

    mask_kernel = functools.partial(
        _fused_mask_kernel, block_size=block_size, H=H, W=W, numel=numel)
    fused = pl.pallas_call(
        mask_kernel,
        out_shape=jax.ShapeDtypeStruct((Cm, H, W), x.dtype),
        grid=(1,),
        in_specs=[pl.BlockSpec((Cm, Hp, Wp), lambda i: (0, 0, 0))],
        out_specs=pl.BlockSpec((Cm, H, W), lambda i: (0, 0, 0)),
        compiler_params=pltpu.CompilerParams(
            dimension_semantics=("arbitrary",)),
    )(maskp)

    # Lane-dense flatten: last dim H*W maps onto the 128-lane axis.
    HW = H * W
    x2 = x.reshape(N, C, HW)
    fused2 = fused.reshape(Cm, HW)

    itemsize = jnp.dtype(x.dtype).itemsize
    tc = _pick_channel_tile(C, HW, itemsize)

    if Cm == 1:   # share_channel=True: one mask row broadcast to all channels
        m_spec = pl.BlockSpec((1, HW), lambda n, c: (0, 0))
    else:
        m_spec = pl.BlockSpec((tc, HW), lambda n, c: (c, 0))

    out2 = pl.pallas_call(
        _apply_kernel,
        out_shape=jax.ShapeDtypeStruct((N, C, HW), x.dtype),
        grid=(N, C // tc),
        in_specs=[
            pl.BlockSpec((None, tc, HW), lambda n, c: (n, c, 0)),  # N squeezed
            m_spec,
        ],
        out_specs=pl.BlockSpec((None, tc, HW), lambda n, c: (n, c, 0)),
        compiler_params=pltpu.CompilerParams(
            dimension_semantics=("parallel", "parallel")),
    )(x2, fused2)

    return out2.reshape(N, C, H, W)


class DropBlock2D:
    """JAX/Pallas port of the PyTorch DropBlock2D forward (training path)."""
    # TODO(synk): the module's step()/reset_steps() drop_prob scheduling is
    # host-side bookkeeping, not kernel work; not ported.

    def __init__(self, drop_prob, block_size, share_channel=False):
        self.drop_prob = float(drop_prob)
        self.block_size = int(block_size)
        self.share_channel = share_channel
        self.training = True

    def __call__(self, x, key):
        if not self.training or self.drop_prob == 0.0:
            return x
        gamma = self.drop_prob / (self.block_size ** 2)
        N, C, H, W = x.shape
        Cm = 1 if self.share_channel else C
        # TODO(synk): could draw the Bernoulli seed inside the mask kernel with
        # pltpu.prng_seed/prng_random_bits to drop the uniform+pad HBM trip.
        seed_mask = (jax.random.uniform(key, (Cm, H, W), dtype=jnp.float32)
                     < gamma).astype(jnp.float32)
        return dropblock2d_forward(x, seed_mask, self.block_size)


# ---------------------------------------------------------------------------
# Pure-JAX reference for correctness checking.
# ---------------------------------------------------------------------------
def _dropblock_ref(x, seed_mask, block_size):
    pad = block_size // 2
    mp = jnp.pad(seed_mask, ((0, 0), (pad, pad), (pad, pad)))
    pooled = jax.lax.reduce_window(
        mp, -jnp.inf, jax.lax.max,
        window_dimensions=(1, block_size, block_size),
        window_strides=(1, 1, 1), padding="VALID")
    block_mask = 1.0 - pooled
    keeped = jnp.maximum(block_mask.sum(), 1.0)
    scale = jnp.float32(block_mask.size) / keeped
    return (x * block_mask[None].astype(x.dtype)
            * scale.astype(x.dtype) if False else
            (x * (block_mask * scale)[None].astype(x.dtype)))


if __name__ == "__main__":
    key = jax.random.PRNGKey(0)
    k_x, k_mask = jax.random.split(key)

    N, C, H, W = 2, 4, 16, 16
    drop_prob, block_size = 0.2, 3
    x = jax.random.normal(k_x, (N, C, H, W), dtype=jnp.float32)

    mod = DropBlock2D(drop_prob=drop_prob, block_size=block_size,
                      share_channel=False)
    out = jax.block_until_ready(mod(x, k_mask))

    assert out.shape == (N, C, H, W)
    assert out.dtype == x.dtype
    assert bool(jnp.all(jnp.isfinite(out)))

    # Cross-check against a pure-JAX reference with the same seed mask.
    gamma = drop_prob / (block_size ** 2)
    seed_mask = (jax.random.uniform(k_mask, (C, H, W), dtype=jnp.float32)
                 < gamma).astype(jnp.float32)
    ref = _dropblock_ref(x, seed_mask, block_size)
    assert jnp.allclose(out, ref, rtol=1e-5, atol=1e-5)

    print("KERNEL_OK")
</pallas_src>

<mosaic_0001>
module attributes {stable_mosaic.version = 11 : i64} {
  func.func @_fused_mask_kernel(%arg0: i32, %arg1: memref<4x18x18xf32, #tpu.memory_space<vmem>>, %arg2: memref<4x16x16xf32, #tpu.memory_space<vmem>>) attributes {dimension_semantics = [#tpu.dimension_semantics<arbitrary>], iteration_bounds = array<i64: 1>, scalar_prefetch = 0 : i64, scratch_operands = 0 : i64, tpu.core_type = #tpu.core_type<tc>, window_params = [{pipeline_mode = #tpu.pipeline_mode<synchronous>, transform_indices = @transform_0, window_bounds = array<i64: 4, 18, 18>}, {pipeline_mode = #tpu.pipeline_mode<synchronous>, transform_indices = @transform_1, window_bounds = array<i64: 4, 16, 16>}]} {
    %c0 = arith.constant 0 : index
    %c0_0 = arith.constant 0 : index
    %c0_1 = arith.constant 0 : index
    %0 = vector.load %arg1[%c0, %c0_0, %c0_1] : memref<4x18x18xf32, #tpu.memory_space<vmem>>, vector<4x18x18xf32>
    %1 = vector.extract_strided_slice %0 {offsets = [0, 0, 0], sizes = [4, 18, 16], strides = [1, 1, 1]} : vector<4x18x18xf32> to vector<4x18x16xf32>
    %2 = vector.extract_strided_slice %0 {offsets = [0, 0, 1], sizes = [4, 18, 16], strides = [1, 1, 1]} : vector<4x18x18xf32> to vector<4x18x16xf32>
    %3 = arith.maximumf %1, %2 : vector<4x18x16xf32>
    %4 = vector.extract_strided_slice %0 {offsets = [0, 0, 2], sizes = [4, 18, 16], strides = [1, 1, 1]} : vector<4x18x18xf32> to vector<4x18x16xf32>
    %5 = arith.maximumf %3, %4 : vector<4x18x16xf32>
    %6 = vector.extract_strided_slice %5 {offsets = [0, 0, 0], sizes = [4, 16, 16], strides = [1, 1, 1]} : vector<4x18x16xf32> to vector<4x16x16xf32>
    %7 = vector.extract_strided_slice %5 {offsets = [0, 1, 0], sizes = [4, 16, 16], strides = [1, 1, 1]} : vector<4x18x16xf32> to vector<4x16x16xf32>
    %8 = arith.maximumf %6, %7 : vector<4x16x16xf32>
    %9 = vector.extract_strided_slice %5 {offsets = [0, 2, 0], sizes = [4, 16, 16], strides = [1, 1, 1]} : vector<4x18x16xf32> to vector<4x16x16xf32>
    %10 = arith.maximumf %8, %9 : vector<4x16x16xf32>
    %cst = arith.constant 1.000000e+00 : f32
    %11 = vector.broadcast %cst : f32 to vector<4x16x16xf32>
    %12 = arith.subf %11, %10 : vector<4x16x16xf32>
    %13 = vector.shape_cast %12 : vector<4x16x16xf32> to vector<1x4x16x16xf32>
    %cst_2 = arith.constant dense<0.000000e+00> : vector<1xf32>
    %14 = vector.multi_reduction <add>, %13, %cst_2 [1, 2, 3] : vector<1x4x16x16xf32> to vector<1xf32>
    %15 = vector.shape_cast %14 : vector<1xf32> to vector<1x1x1x1xf32>
    %16 = vector.extract %15[0, 0, 0, 0] : f32 from vector<1x1x1x1xf32>
    %cst_3 = arith.constant 1.000000e+00 : f32
    %17 = arith.maximumf %16, %cst_3 : f32
    %cst_4 = arith.constant 1.024000e+03 : f32
    %18 = arith.divf %cst_4, %17 : f32
    %19 = vector.broadcast %18 : f32 to vector<4x16x16xf32>
    %20 = arith.mulf %12, %19 : vector<4x16x16xf32>
    %c0_5 = arith.constant 0 : index
    %c0_6 = arith.constant 0 : index
    %c0_7 = arith.constant 0 : index
    %21 = vector.load %arg2[%c0_5, %c0_6, %c0_7] : memref<4x16x16xf32, #tpu.memory_space<vmem>>, vector<4x16x16xf32>
    tpu.vector_store %arg2[%c0_5, %c0_6, %c0_7], %20 {strides = array<i32>} : memref<4x16x16xf32, #tpu.memory_space<vmem>>, vector<4x16x16xf32>,
    return
  }
  func.func @transform_0(%arg0: i32) -> (i32, i32, i32) {
    %c0_i32 = arith.constant 0 : i32
    %c0_i32_0 = arith.constant 0 : i32
    %c0_i32_1 = arith.constant 0 : i32
    %c0_i32_2 = arith.constant 0 : i32
    return %c0_i32, %c0_i32_0, %c0_i32_1 : i32, i32, i32
  }
  func.func @transform_1(%arg0: i32) -> (i32, i32, i32) {
    %c0_i32 = arith.constant 0 : i32
    %c0_i32_0 = arith.constant 0 : i32
    %c0_i32_1 = arith.constant 0 : i32
    %c0_i32_2 = arith.constant 0 : i32
    return %c0_i32, %c0_i32_0, %c0_i32_1 : i32, i32, i32
  }
}

</mosaic_0001>

<llo_original>
// kernel: tpu_custom_call.1
$region0: #{tpu_custom_call.1}
  #allocation0 [shape = 'u32[]', space=smem, size = 0x4, offset = 0x4, fixed_abs, tag = 'smem constant byte address 0x4 - core index']
  #allocation1 [shape = 'u32[144,128]{1,0:T(1,128)}', space=vmem, size = 0x12000, scoped, tag = 'internal scratch']
  %s0 = inlined_call_operand.vmem [shape: f32[4,18,18], index: 0, kind: input, shape index: {}]
  %s1 = inlined_call_operand.hbm [shape: f32[4,16,16], index: 1, kind: output, shape index: {}]
  %s2 = sld [smem:[#allocation0]]
  $region14: #{tpu_custom_call.1} parent=0
    _
  %s4 = ssub.s32 1, %s2
  %s5 = scalar_select 0, %s4, %s2
  $region1: #{tpu_custom_call.1} parent=0
    #allocation2 [shape = 'u8[32768]{0}', space=vmem, size = 0x8000, scoped, tag = 'output window, operand 0, single buffered']
    #allocation3 [shape = 's32[1]{0}', space=sflag, size = 0x4, scoped, tag = 'scoped memory for tpu_custom_call.1']
    %6 = vsyncpa [#allocation3], 0
    // Predicated region
    $region2: #{tpu_custom_call.1} parent=1 // pred_check
      _
    $region3: #{tpu_custom_call.1} parent=1 // pred_check_branch
      %8 = sbr.rel (0) target = $region5
    $region4: #{tpu_custom_call.1} parent=1 // pred_region
      _
    $region5: #{tpu_custom_call.1} parent=1 // pred_fallthru
      _
    %v9 = vld [vmem:[%s0] sm:$0xff]
    %v10 = vld [vmem:[%s0 + $0x8] sm:$0xff]
    %v11 = vld [vmem:[%s0 + $0x10] sm:$0x3]
    %v12 = vld [vmem:[%s0 + $0x18] sm:$0xff]
    %v13 = vld [vmem:[%s0 + $0x20] sm:$0xff]
    %v14 = vld [vmem:[%s0 + $0x28] sm:$0x3]
    %v15 = vld [vmem:[%s0 + $0x30] sm:$0xff]
    %v16 = vld [vmem:[%s0 + $0x38] sm:$0xff]
    %v17 = vld [vmem:[%s0 + $0x40] sm:$0x3]
    %v18 = vld [vmem:[%s0 + $0x48] sm:$0xff]
    %v19 = vld [vmem:[%s0 + $0x50] sm:$0xff]
    %v20 = vld [vmem:[%s0 + $0x58] sm:$0x3]
    %33 = vrot.lane.b32.xlu0 %v9, 127
    %v34 = vpop.permute.xlu0 %33
    %35 = vrot.lane.b32.xlu0 %v10, 127
    %v36 = vpop.permute.xlu0 %35
    %37 = vrot.lane.b32.xlu0 %v11, 127
    %v38 = vpop.permute.xlu0 %37
    %39 = vrot.lane.b32.xlu0 %v12, 127
    %v40 = vpop.permute.xlu0 %39
    %41 = vrot.lane.b32.xlu0 %v13, 127
    %v42 = vpop.permute.xlu0 %41
    %43 = vrot.lane.b32.xlu0 %v14, 127
    %v44 = vpop.permute.xlu0 %43
    %45 = vrot.lane.b32.xlu0 %v15, 127
    %v46 = vpop.permute.xlu0 %45
    %47 = vrot.lane.b32.xlu0 %v16, 127
    %v48 = vpop.permute.xlu0 %47
    %49 = vrot.lane.b32.xlu0 %v17, 127
    %v50 = vpop.permute.xlu0 %49
    %51 = vrot.lane.b32.xlu0 %v18, 127
    %v52 = vpop.permute.xlu0 %51
    %53 = vrot.lane.b32.xlu0 %v19, 127
    %v54 = vpop.permute.xlu0 %53
    %55 = vrot.lane.b32.xlu0 %v20, 127
    %v56 = vpop.permute.xlu0 %55
    %v69 = vmax.f32 %v9, %v34
    %v70 = vmax.f32 %v10, %v36
    %v71 = vmax.f32 %v11, %v38
    %v72 = vmax.f32 %v12, %v40
    %v73 = vmax.f32 %v13, %v42
    %v74 = vmax.f32 %v14, %v44
    %v75 = vmax.f32 %v15, %v46
    %v76 = vmax.f32 %v16, %v48
    %v77 = vmax.f32 %v17, %v50
    %v78 = vmax.f32 %v18, %v52
    %v79 = vmax.f32 %v19, %v54
    %v80 = vmax.f32 %v20, %v56
    %81 = vrot.lane.b32.xlu0 %v9, 126
    %v82 = vpop.permute.xlu0 %81
    %83 = vrot.lane.b32.xlu0 %v10, 126
    %v84 = vpop.permute.xlu0 %83
    %85 = vrot.lane.b32.xlu0 %v11, 126
    %v86 = vpop.permute.xlu0 %85
    %87 = vrot.lane.b32.xlu0 %v12, 126
    %v88 = vpop.permute.xlu0 %87
    %89 = vrot.lane.b32.xlu0 %v13, 126
    %v90 = vpop.permute.xlu0 %89
    %91 = vrot.lane.b32.xlu0 %v14, 126
    %v92 = vpop.permute.xlu0 %91
    %93 = vrot.lane.b32.xlu0 %v15, 126
    %v94 = vpop.permute.xlu0 %93
    %95 = vrot.lane.b32.xlu0 %v16, 126
    %v96 = vpop.permute.xlu0 %95
    %97 = vrot.lane.b32.xlu0 %v17, 126
    %v98 = vpop.permute.xlu0 %97
    %99 = vrot.lane.b32.xlu0 %v18, 126
    %v100 = vpop.permute.xlu0 %99
    %101 = vrot.lane.b32.xlu0 %v19, 126
    %v102 = vpop.permute.xlu0 %101
    %103 = vrot.lane.b32.xlu0 %v20, 126
    %v104 = vpop.permute.xlu0 %103
    %v117 = vmax.f32 %v69, %v82
    %v118 = vmax.f32 %v70, %v84
    %v119 = vmax.f32 %v71, %v86
    %v120 = vmax.f32 %v72, %v88
    %v121 = vmax.f32 %v73, %v90
    %v122 = vmax.f32 %v74, %v92
    %v123 = vmax.f32 %v75, %v94
    %v124 = vmax.f32 %v76, %v96
    %v125 = vmax.f32 %v77, %v98
    %v126 = vmax.f32 %v78, %v100
    %v127 = vmax.f32 %v79, %v102
    %v128 = vmax.f32 %v80, %v104
    %vm141 = vcmask 1046528
    %v142 = vrot.slane %v117, 1
    %v143 = vrot.slane %v118, 1
    %v144 = vsel %vm141, %v142, %v143
    %v145 = vrot.slane %v119, 1
    %v146 = vsel %vm141, %v143, %v145
    %v147 = vrot.slane %v120, 1
    %v148 = vrot.slane %v121, 1
    %v149 = vsel %vm141, %v147, %v148
    %v150 = vrot.slane %v122, 1
    %v151 = vsel %vm141, %v148, %v150
    %v152 = vrot.slane %v123, 1
    %v153 = vrot.slane %v124, 1
    %v154 = vsel %vm141, %v152, %v153
    %v155 = vrot.slane %v125, 1
    %v156 = vsel %vm141, %v153, %v155
    %v157 = vrot.slane %v126, 1
    %v158 = vrot.slane %v127, 1
    %v159 = vsel %vm141, %v157, %v158
    %v160 = vrot.slane %v128, 1
    %v161 = vsel %vm141, %v158, %v160
    %v170 = vmax.f32 %v117, %v144
    %v171 = vmax.f32 %v118, %v146
    %v172 = vmax.f32 %v120, %v149
    %v173 = vmax.f32 %v121, %v151
    %v174 = vmax.f32 %v123, %v154
    %v175 = vmax.f32 %v124, %v156
    %v176 = vmax.f32 %v126, %v159
    %v177 = vmax.f32 %v127, %v161
    %vm178 = vcmask 1045504
    %v179 = vrot.slane %v117, 2
    %v180 = vrot.slane %v118, 2
    %v181 = vsel %vm178, %v179, %v180
    %v182 = vrot.slane %v119, 2
    %v183 = vsel %vm178, %v180, %v182
    %v184 = vrot.slane %v120, 2
    %v185 = vrot.slane %v121, 2
    %v186 = vsel %vm178, %v184, %v185
    %v187 = vrot.slane %v122, 2
    %v188 = vsel %vm178, %v185, %v187
    %v189 = vrot.slane %v123, 2
    %v190 = vrot.slane %v124, 2
    %v191 = vsel %vm178, %v189, %v190
    %v192 = vrot.slane %v125, 2
    %v193 = vsel %vm178, %v190, %v192
    %v194 = vrot.slane %v126, 2
    %v195 = vrot.slane %v127, 2
    %v196 = vsel %vm178, %v194, %v195
    %v197 = vrot.slane %v128, 2
    %v198 = vsel %vm178, %v195, %v197
    %v207 = vmax.f32 %v170, %v181
    %v208 = vmax.f32 %v171, %v183
    %v209 = vmax.f32 %v172, %v186
    %v210 = vmax.f32 %v173, %v188
    %v211 = vmax.f32 %v174, %v191
    %v212 = vmax.f32 %v175, %v193
    %v213 = vmax.f32 %v176, %v196
    %v214 = vmax.f32 %v177, %v198
    %v215 = vsub.f32 1.0, %v207
    %v216 = vsub.f32 1.0, %v208
    %v217 = vsub.f32 1.0, %v209
    %v218 = vsub.f32 1.0, %v210
    %v219 = vsub.f32 1.0, %v211
    %v220 = vsub.f32 1.0, %v212
    %v221 = vsub.f32 1.0, %v213
    %v222 = vsub.f32 1.0, %v214
    %vm223 = vcmask 130048
    %v224 = vsel %vm223, %v215, 0.0
    %v225 = vsel %vm223, %v216, 0.0
    %v226 = vadd.f32 %v224, %v225
    %v227 = vsel %vm223, %v217, 0.0
    %v228 = vadd.f32 %v226, %v227
    %v229 = vsel %vm223, %v218, 0.0
    %v230 = vadd.f32 %v228, %v229
    %v231 = vsel %vm223, %v219, 0.0
    %v232 = vadd.f32 %v230, %v231
    %v233 = vsel %vm223, %v220, 0.0
    %v234 = vadd.f32 %v232, %v233
    %v235 = vsel %vm223, %v221, 0.0
    %v236 = vadd.f32 %v234, %v235
    %v237 = vsel %vm223, %v222, 0.0
    %v238 = vadd.f32 %v236, %v237
    %239 = vadd.xlane.f32.xlu0 %v238
    %v240 = vpop.xlane.xlu0 %239
    %v241 = vrot.slane %v240, 4
    %v242 = vadd.f32 %v240, %v241
    %v243 = vrot.slane %v242, 2
    %v244 = vadd.f32 %v242, %v243
    %v245 = vrot.slane %v244, 1
    %v246 = vadd.f32 %v244, %v245
    %s247 = vtos %v246
    %s248 = smax.f32 %s247, 1.0
    %v249 = vstv %s248
    %v250 = vrcp.pop %v249
    %s251 = vtos %v250
    %s252 = smul.f32 1024.0, %s251
    %v253 = vstv %s252
    %v254 = vmul.f32 %v215, %v253
    %v255 = vmul.f32 %v216, %v253
    %v256 = vmul.f32 %v217, %v253
    %v257 = vmul.f32 %v218, %v253
    %v258 = vmul.f32 %v219, %v253
    %v259 = vmul.f32 %v220, %v253
    %v260 = vmul.f32 %v221, %v253
    %v261 = vmul.f32 %v222, %v253
    %262 = vst.msk [vmem:[#allocation2] sm:$0xff] %vm223, %v254
    %263 = vst.msk [vmem:[#allocation2 + $0x8] sm:$0xff] %vm223, %v255
    %264 = vst.msk [vmem:[#allocation2 + $0x10] sm:$0xff] %vm223, %v256
    %265 = vst.msk [vmem:[#allocation2 + $0x18] sm:$0xff] %vm223, %v257
    %266 = vst.msk [vmem:[#allocation2 + $0x20] sm:$0xff] %vm223, %v258
    %267 = vst.msk [vmem:[#allocation2 + $0x28] sm:$0xff] %vm223, %v259
    %268 = vst.msk [vmem:[#allocation2 + $0x30] sm:$0xff] %vm223, %v260
    %269 = vst.msk [vmem:[#allocation2 + $0x38] sm:$0xff] %vm223, %v261
    // Predicated region
    $region6: #{tpu_custom_call.1} parent=1 // pred_check
      _
    $region7: #{tpu_custom_call.1} parent=1 // pred_check_branch
      %271 = sbr.rel (0) target = $region9
    $region8: #{tpu_custom_call.1} parent=1 // pred_region
      %s273 = ssub.s32 1024, 1024
      %274 = vsyncadd [#allocation3], %s273
      %s275 = sshll.u32 [#allocation2], 4
      %s276 = int_to_ptr.vmem [resolvable:$true] %s275
      %281 = dma.vmem_to_hbm [thread:$0]  %s276, 1024, %s1, [#allocation3], 128, 128, 8
    $region9: #{tpu_custom_call.1} parent=1 // pred_fallthru
      _
    // Predicated region
    $region10: #{tpu_custom_call.1} parent=1 // pred_check
      _
    $region11: #{tpu_custom_call.1} parent=1 // pred_check_branch
      %283 = sbr.rel (0) target = $region13
    $region12: #{tpu_custom_call.1} parent=1 // pred_region
      %284 = dma.done [#allocation3], 1024
    $region13: #{tpu_custom_call.1} parent=1 // pred_fallthru
      _
    %285 = vsyncpa [#allocation3], 1

</llo_original>
